<compile_context>
chip_gen: v6e
topology: v6e:2x2x1
jax: 0.10.0
libtpu: 0.0.40
codegen_flags: <defaults>
</compile_context>

<pallas_src>
import functools

import numpy as np
import jax
import jax.numpy as jnp
from jax import lax
from jax.experimental import pallas as pl
from jax.experimental.pallas import tpu as pltpu

_STAT_LANES = 128  # lane-dense width for per-sample stat outputs


def _round_up(x, m):
    return -(-x // m) * m


# ------------------------------ Pallas kernel ------------------------------ #

def _fused_kernel(pmu_ref, pvar_ref, x_ref,                 # inputs
                  out_ref, mu_ref, varc_ref,                # outputs
                  acc_sum, acc_sq, s_mu, s_var, stale_mu, inv_scale,  # scratch
                  *, afwd, eps, inv_hw, n_pad):
    n = pl.program_id(0)
    t = pl.program_id(1)
    last_t = pl.num_programs(1) - 1

    # --- batch start: reset current-batch contribution of the stream ema ---
    @pl.when(jnp.logical_and(n == 0, t == 0))
    def _():
        s_mu[...] = jnp.zeros_like(s_mu)
        s_var[...] = jnp.zeros_like(s_var)

    # --- sample start: stale stats for this sample, reset moment accumulators ---
    @pl.when(t == 0)
    def _():
        stale_mu[...] = pmu_ref[0] + s_mu[...]                        # (C, 1)
        inv_scale[...] = lax.rsqrt(pvar_ref[0] + s_var[...] + eps)    # (C, 1)
        acc_sum[...] = jnp.zeros_like(acc_sum)
        acc_sq[...] = jnp.zeros_like(acc_sq)

    # --- hot path: normalize this HW tile, accumulate per-tile XLU reductions
    # of the centered residual into tiny (C, 1) accumulators (1 load + 1 wide
    # store per x vreg; the cross-lane sums ride the otherwise idle XLU slot).
    x = x_ref[0].astype(jnp.float32)                                  # (C, T)
    d = x - stale_mu[...]
    out_ref[0] = (d * inv_scale[...]).astype(out_ref.dtype)
    acc_sum[...] += jnp.sum(d, axis=-1, keepdims=True)
    acc_sq[...] += jnp.sum(d * d, axis=-1, keepdims=True)

    # --- sample end: finalize moments, emit stats, advance running state ---
    @pl.when(t == last_t)
    def _():
        c, lanes = mu_ref.shape[1], mu_ref.shape[2]
        sm = stale_mu[...]
        sum_d = acc_sum[...]
        sum_d2 = acc_sq[...]
        if n_pad:  # zero-padded lanes contribute d = -stale_mu each; undo exactly
            sum_d = sum_d + n_pad * sm
            sum_d2 = sum_d2 - n_pad * (sm * sm)
        mean_d = sum_d * inv_hw                   # = mu - stale_mu   (C, 1)
        var = sum_d2 * inv_hw - mean_d * mean_d   # per-sample spatial variance
        mu = sm + mean_d
        var_curr = var + afwd * mean_d * mean_d
        mu_ref[0] = jnp.broadcast_to(mu, (c, lanes))
        varc_ref[0] = jnp.broadcast_to(var_curr, (c, lanes))
        s_mu[...] = afwd * s_mu[...] + (1.0 - afwd) * mu
        s_var[...] = afwd * s_var[...] + (1.0 - afwd) * var_curr


# ------------------------- tiling / VMEM sizing ----------------------------- #

def _vmem_budget_and_limit():
    """Generation-aware working-set budget and scoped-VMEM limit (bytes)."""
    cap = 64 << 20  # conservative default = v7x per-TC physical VMEM
    try:
        cap = int(pltpu.get_tpu_info().vmem_capacity_bytes)
    except Exception:
        pass
    # ~1/4 of physical VMEM for the pipelined working set:
    #   v5e/v6e (128 MiB) -> 32 MiB, v7x (64 MiB) -> 16 MiB.
    budget = max(8 << 20, min(cap // 4, 32 << 20))
    limit = min(cap // 2, 64 << 20)        # v7x: 32 MiB; v5e/v6e: 64 MiB
    limit = max(limit, budget + (4 << 20))
    return budget, limit


def _choose_tile_and_pad(hw, c, itemsize, budget, in_bufs=3, out_bufs=2):
    """128-aligned lane tile + padded spatial size it divides, within budget."""
    per_lane = c * (in_bufs + out_bufs) * itemsize     # pipelined x-in + out tiles
    max_tile = max(128, (budget // per_lane) // 128 * 128)
    hw128 = _round_up(hw, 128)
    if hw128 <= max_tile:
        return hw128, hw128                            # one tile per sample
    n_t = -(-hw128 // max_tile)                        # ceil
    tile = _round_up(-(-hw128 // n_t), 128)
    return tile, tile * n_t


def _maybe_buffered_spec(shape, index_map, n_buffers):
    """BlockSpec with deeper pipelining when this jax version supports it."""
    if n_buffers > 2:
        try:
            return pl.BlockSpec(shape, index_map, pipeline_mode=pl.Buffered(n_buffers))
        except Exception:
            pass
    return pl.BlockSpec(shape, index_map)


# ------------------- JAX glue (tiny O(b^2 * C) lin_momentum) ---------------- #

def _momentum_weight(b, momentum):
    """Host-side constant W s.t. (W @ cat)[j] == conv1d(cat, afwd**range(b-1,-1,-1))[j]."""
    w = np.zeros((b, 2 * b - 1), np.float32)
    for j in range(b):
        for k in range(b):
            w[j, j + k] = momentum ** (b - 1 - k)
    return jnp.asarray(w)


def _lin_momentum(mu_prev, mu_curr, mu_stream, momentum, w, momentum_batch):
    """Exact JAX port of the PyTorch lin_momentum (conv1d -> small matmul)."""
    cat = jnp.concatenate([mu_prev[1:], mu_curr], axis=0)       # (2b-1, C)
    tmp = w @ cat                                               # (b, C)
    curr = momentum_batch * mu_stream + (1.0 - momentum) * tmp
    stale = jnp.concatenate([mu_stream[-1:], curr[:-1]], axis=0)
    return stale, curr


def init_state(b_size, num_features):
    """Deterministic buffer init, matching ControlNorm2D.init_norm_params()."""
    z = jnp.zeros((b_size, num_features), jnp.float32)
    o = jnp.ones((b_size, num_features), jnp.float32)
    return dict(m=z, var=o, m_p=z, var_p=o)


# --------------------------------- forward ---------------------------------- #

def control_norm2d_forward(x, state, *, alpha_fwd=0.999, eps=1e-5):
    """Training-mode forward of ControlNorm2D. Returns (out, new_state)."""
    n, c, h, w = x.shape
    hw = h * w
    itemsize = int(jnp.dtype(x.dtype).itemsize)

    budget, vmem_limit = _vmem_budget_and_limit()
    tile, hw_pad = _choose_tile_and_pad(hw, c, itemsize, budget)
    n_t = hw_pad // tile
    n_pad = hw_pad - hw

    x3 = x.reshape(n, c, hw)
    if n_pad:
        x3 = jnp.pad(x3, ((0, 0), (0, 0), (0, n_pad)))

    wmat = _momentum_weight(n, alpha_fwd)
    af_batch = alpha_fwd ** n
    zeros_nc = jnp.zeros((n, c), jnp.float32)

    # Previous-state contribution to each sample's stale stream stats (linear
    # decomposition of lin_momentum; the current-batch part is the sequential
    # recurrence carried inside the kernel).
    pprev_mu, _ = _lin_momentum(state["m_p"], zeros_nc, state["m"],
                                alpha_fwd, wmat, af_batch)
    pprev_var, _ = _lin_momentum(state["var_p"], zeros_nc, state["var"],
                                 alpha_fwd, wmat, af_batch)

    cost = pl.CostEstimate(flops=7 * n * c * hw_pad,
                           transcendentals=n * c,
                           bytes_accessed=2 * n * c * hw_pad * itemsize)

    x_bufs = 3 if n * n_t >= 3 else 2
    x_spec = _maybe_buffered_spec((1, c, tile), lambda i, t: (i, 0, t), x_bufs)

    out3, mu_l, var_curr_l = pl.pallas_call(
        functools.partial(_fused_kernel, afwd=float(alpha_fwd), eps=float(eps),
                          inv_hw=1.0 / float(hw), n_pad=float(n_pad)),
        out_shape=(jax.ShapeDtypeStruct((n, c, hw_pad), x.dtype),
                   jax.ShapeDtypeStruct((n, c, _STAT_LANES), jnp.float32),
                   jax.ShapeDtypeStruct((n, c, _STAT_LANES), jnp.float32)),
        grid_spec=pltpu.PrefetchScalarGridSpec(
            num_scalar_prefetch=0,
            grid=(n, n_t),
            in_specs=[pl.BlockSpec((1, c, 1), lambda i, t: (i, 0, 0)),
                      pl.BlockSpec((1, c, 1), lambda i, t: (i, 0, 0)),
                      x_spec],
            out_specs=[pl.BlockSpec((1, c, tile), lambda i, t: (i, 0, t)),
                       pl.BlockSpec((1, c, _STAT_LANES), lambda i, t: (i, 0, 0)),
                       pl.BlockSpec((1, c, _STAT_LANES), lambda i, t: (i, 0, 0))],
            scratch_shapes=[pltpu.VMEM((c, 1), jnp.float32),   # acc_sum
                            pltpu.VMEM((c, 1), jnp.float32),   # acc_sq
                            pltpu.VMEM((c, 1), jnp.float32),   # s_mu
                            pltpu.VMEM((c, 1), jnp.float32),   # s_var
                            pltpu.VMEM((c, 1), jnp.float32),   # stale_mu
                            pltpu.VMEM((c, 1), jnp.float32)]), # inv_scale
        compiler_params=pltpu.CompilerParams(
            dimension_semantics=("arbitrary", "arbitrary"),
            vmem_limit_bytes=int(vmem_limit)),
        cost_estimate=cost,
    )(pprev_mu[..., None], pprev_var[..., None], x3)

    mu = mu_l[..., 0]                 # (N, C) per-sample spatial mean  (-> m_p)
    var_current = var_curr_l[..., 0]  # (N, C)                          (-> var_p)

    # Stream (ema) buffers for the next iteration — exact PyTorch lin_momentum.
    _, m_new = _lin_momentum(state["m_p"], mu, state["m"],
                             alpha_fwd, wmat, af_batch)
    _, var_new = _lin_momentum(state["var_p"], var_current, state["var"],
                               alpha_fwd, wmat, af_batch)

    new_state = dict(m=m_new, var=var_new, m_p=mu, var_p=var_current)
    out = out3[..., :hw].reshape(n, c, h, w)
    return out, new_state


# -------------------------------- reference -------------------------------- #

def _reference_forward(x, state, alpha_fwd, eps):
    n, c, h, w = x.shape
    xf = x.astype(jnp.float32)
    mu = jnp.mean(xf, axis=(2, 3))
    var = jnp.mean((xf - mu[..., None, None]) ** 2, axis=(2, 3))
    wmat = _momentum_weight(n, alpha_fwd)
    af_batch = alpha_fwd ** n
    mu_b_stale, mu_b = _lin_momentum(state["m_p"], mu, state["m"],
                                     alpha_fwd, wmat, af_batch)
    var_current = var + alpha_fwd * (mu - mu_b_stale) ** 2
    var_b_stale, var_b = _lin_momentum(state["var_p"], var_current, state["var"],
                                       alpha_fwd, wmat, af_batch)
    scale = jnp.sqrt(var_b_stale + eps)[..., None, None]
    out = (xf - mu_b_stale[..., None, None]) / scale
    new_state = dict(m=mu_b, var=var_b, m_p=mu, var_p=var_current)
    return out, new_state


def _check_case(x, state, alpha_fwd=0.999, eps=1e-5, tol=1e-4):
    out, new_state = control_norm2d_forward(x, state, alpha_fwd=alpha_fwd, eps=eps)
    out = jax.block_until_ready(out)
    new_state = jax.block_until_ready(new_state)
    ref_out, ref_state = _reference_forward(x, state, alpha_fwd, eps)
    assert out.shape == x.shape
    err = float(jnp.max(jnp.abs(out - ref_out)))
    assert err < tol, f"output mismatch vs reference: {err}"
    for k in ("m", "var", "m_p", "var_p"):
        e = float(jnp.max(jnp.abs(new_state[k] - ref_state[k])))
        assert e < tol, f"state[{k}] mismatch vs reference: {e}"


# ---------------------------------- main ----------------------------------- #

if __name__ == "__main__":
    key = jax.random.PRNGKey(0)
    k0, k1, k2, k3, k4, k5 = jax.random.split(key, 6)

    # Case 1: module defaults — b_size=2, num_features=4, 16x16 spatial.
    x1 = jax.random.normal(k0, (2, 4, 16, 16), dtype=jnp.float32)
    _check_case(x1, init_state(2, 4))

    # Case 2: non-128-multiple spatial (7x7, exercises padding), N=3, C=8,
    # non-trivial incoming stream / previous-batch buffers, non-zero-mean x.
    n2, c2 = 3, 8
    state2 = dict(
        m=0.3 * jax.random.normal(k1, (n2, c2), dtype=jnp.float32),
        var=1.0 + 0.5 * jax.random.uniform(k2, (n2, c2), dtype=jnp.float32),
        m_p=0.3 * jax.random.normal(k3, (n2, c2), dtype=jnp.float32),
        var_p=1.0 + 0.5 * jax.random.uniform(k4, (n2, c2), dtype=jnp.float32),
    )
    x2 = 1.5 * jax.random.normal(k5, (n2, c2, 7, 7), dtype=jnp.float32) + 0.7
    _check_case(x2, state2)

    print("KERNEL_OK")
</pallas_src>

<mosaic_0001>
module attributes {stable_mosaic.version = 11 : i64} {
  func.func @_fused_kernel(%arg0: i32, %arg1: i32, %arg2: memref<1x4x1xf32, #tpu.memory_space<vmem>>, %arg3: memref<1x4x1xf32, #tpu.memory_space<vmem>>, %arg4: memref<1x4x256xf32, #tpu.memory_space<vmem>>, %arg5: memref<1x4x256xf32, #tpu.memory_space<vmem>>, %arg6: memref<1x4x128xf32, #tpu.memory_space<vmem>>, %arg7: memref<1x4x128xf32, #tpu.memory_space<vmem>>, %arg8: memref<4x1xf32, #tpu.memory_space<vmem>>, %arg9: memref<4x1xf32, #tpu.memory_space<vmem>>, %arg10: memref<4x1xf32, #tpu.memory_space<vmem>>, %arg11: memref<4x1xf32, #tpu.memory_space<vmem>>, %arg12: memref<4x1xf32, #tpu.memory_space<vmem>>, %arg13: memref<4x1xf32, #tpu.memory_space<vmem>>) attributes {dimension_semantics = [#tpu.dimension_semantics<arbitrary>, #tpu.dimension_semantics<arbitrary>], iteration_bounds = array<i64: 2, 1>, scalar_prefetch = 0 : i64, scratch_operands = 6 : i64, tpu.core_type = #tpu.core_type<tc>, window_params = [{transform_indices = @transform_0, window_bounds = array<i64: 1, 4, 1>}, {transform_indices = @transform_1, window_bounds = array<i64: 1, 4, 1>}, {transform_indices = @transform_2, window_bounds = array<i64: 1, 4, 256>}, {transform_indices = @transform_3, window_bounds = array<i64: 1, 4, 256>}, {transform_indices = @transform_4, window_bounds = array<i64: 1, 4, 128>}, {transform_indices = @transform_5, window_bounds = array<i64: 1, 4, 128>}]} {
    %c0_i32 = arith.constant 0 : i32
    %0 = arith.cmpi eq, %arg0, %c0_i32 : i32
    %c0_i32_0 = arith.constant 0 : i32
    %1 = arith.cmpi eq, %arg1, %c0_i32_0 : i32
    %2 = arith.andi %0, %1 : i1
    %3 = arith.extui %2 : i1 to i32
    %c0_i32_1 = arith.constant 0 : i32
    %4 = arith.cmpi ne, %3, %c0_i32_1 : i32
    scf.if %4 {
      %cst_24 = arith.constant 0.000000e+00 : f32
      %33 = vector.broadcast %cst_24 : f32 to vector<4x1xf32>
      %c0_25 = arith.constant 0 : index
      %c0_26 = arith.constant 0 : index
      %34 = vector.load %arg10[%c0_25, %c0_26] : memref<4x1xf32, #tpu.memory_space<vmem>>, vector<4x1xf32>
      tpu.vector_store %arg10[%c0_25, %c0_26], %33 {strides = array<i32>} : memref<4x1xf32, #tpu.memory_space<vmem>>, vector<4x1xf32>,
      %cst_27 = arith.constant 0.000000e+00 : f32
      %35 = vector.broadcast %cst_27 : f32 to vector<4x1xf32>
      %c0_28 = arith.constant 0 : index
      %c0_29 = arith.constant 0 : index
      %36 = vector.load %arg11[%c0_28, %c0_29] : memref<4x1xf32, #tpu.memory_space<vmem>>, vector<4x1xf32>
      tpu.vector_store %arg11[%c0_28, %c0_29], %35 {strides = array<i32>} : memref<4x1xf32, #tpu.memory_space<vmem>>, vector<4x1xf32>,
    } else {
    }
    %c0_i32_2 = arith.constant 0 : i32
    %5 = arith.cmpi eq, %arg1, %c0_i32_2 : i32
    %6 = arith.extui %5 : i1 to i32
    %c0_i32_3 = arith.constant 0 : i32
    %7 = arith.cmpi ne, %6, %c0_i32_3 : i32
    scf.if %7 {
      %c0_24 = arith.constant 0 : index
      %c0_25 = arith.constant 0 : index
      %c0_26 = arith.constant 0 : index
      %33 = vector.load %arg2[%c0_24, %c0_25, %c0_26] : memref<1x4x1xf32, #tpu.memory_space<vmem>>, vector<1x4x1xf32>
      %34 = vector.shape_cast %33 : vector<1x4x1xf32> to vector<4x1xf32>
      %c0_27 = arith.constant 0 : index
      %c0_28 = arith.constant 0 : index
      %35 = vector.load %arg10[%c0_27, %c0_28] : memref<4x1xf32, #tpu.memory_space<vmem>>, vector<4x1xf32>
      %36 = arith.addf %34, %35 : vector<4x1xf32>
      %c0_29 = arith.constant 0 : index
      %c0_30 = arith.constant 0 : index
      %37 = vector.load %arg12[%c0_29, %c0_30] : memref<4x1xf32, #tpu.memory_space<vmem>>, vector<4x1xf32>
      tpu.vector_store %arg12[%c0_29, %c0_30], %36 {strides = array<i32>} : memref<4x1xf32, #tpu.memory_space<vmem>>, vector<4x1xf32>,
      %c0_31 = arith.constant 0 : index
      %c0_32 = arith.constant 0 : index
      %c0_33 = arith.constant 0 : index
      %38 = vector.load %arg3[%c0_31, %c0_32, %c0_33] : memref<1x4x1xf32, #tpu.memory_space<vmem>>, vector<1x4x1xf32>
      %39 = vector.shape_cast %38 : vector<1x4x1xf32> to vector<4x1xf32>
      %c0_34 = arith.constant 0 : index
      %c0_35 = arith.constant 0 : index
      %40 = vector.load %arg11[%c0_34, %c0_35] : memref<4x1xf32, #tpu.memory_space<vmem>>, vector<4x1xf32>
      %41 = arith.addf %39, %40 : vector<4x1xf32>
      %cst_36 = arith.constant 9.99999974E-6 : f32
      %42 = vector.broadcast %cst_36 : f32 to vector<4x1xf32>
      %43 = arith.addf %41, %42 : vector<4x1xf32>
      %44 = math.rsqrt %43 : vector<4x1xf32>
      %c0_37 = arith.constant 0 : index
      %c0_38 = arith.constant 0 : index
      %45 = vector.load %arg13[%c0_37, %c0_38] : memref<4x1xf32, #tpu.memory_space<vmem>>, vector<4x1xf32>
      tpu.vector_store %arg13[%c0_37, %c0_38], %44 {strides = array<i32>} : memref<4x1xf32, #tpu.memory_space<vmem>>, vector<4x1xf32>,
      %cst_39 = arith.constant 0.000000e+00 : f32
      %46 = vector.broadcast %cst_39 : f32 to vector<4x1xf32>
      %c0_40 = arith.constant 0 : index
      %c0_41 = arith.constant 0 : index
      %47 = vector.load %arg8[%c0_40, %c0_41] : memref<4x1xf32, #tpu.memory_space<vmem>>, vector<4x1xf32>
      tpu.vector_store %arg8[%c0_40, %c0_41], %46 {strides = array<i32>} : memref<4x1xf32, #tpu.memory_space<vmem>>, vector<4x1xf32>,
      %cst_42 = arith.constant 0.000000e+00 : f32
      %48 = vector.broadcast %cst_42 : f32 to vector<4x1xf32>
      %c0_43 = arith.constant 0 : index
      %c0_44 = arith.constant 0 : index
      %49 = vector.load %arg9[%c0_43, %c0_44] : memref<4x1xf32, #tpu.memory_space<vmem>>, vector<4x1xf32>
      tpu.vector_store %arg9[%c0_43, %c0_44], %48 {strides = array<i32>} : memref<4x1xf32, #tpu.memory_space<vmem>>, vector<4x1xf32>,
    } else {
    }
    %c0 = arith.constant 0 : index
    %c0_4 = arith.constant 0 : index
    %c0_5 = arith.constant 0 : index
    %8 = vector.load %arg4[%c0, %c0_4, %c0_5] : memref<1x4x256xf32, #tpu.memory_space<vmem>>, vector<1x4x256xf32>
    %9 = vector.shape_cast %8 : vector<1x4x256xf32> to vector<4x256xf32>
    %c0_6 = arith.constant 0 : index
    %c0_7 = arith.constant 0 : index
    %10 = vector.load %arg12[%c0_6, %c0_7] : memref<4x1xf32, #tpu.memory_space<vmem>>, vector<4x1xf32>
    %11 = vector.broadcast %10 : vector<4x1xf32> to vector<4x256xf32>
    %12 = arith.subf %9, %11 : vector<4x256xf32>
    %c0_8 = arith.constant 0 : index
    %c0_9 = arith.constant 0 : index
    %13 = vector.load %arg13[%c0_8, %c0_9] : memref<4x1xf32, #tpu.memory_space<vmem>>, vector<4x1xf32>
    %14 = vector.broadcast %13 : vector<4x1xf32> to vector<4x256xf32>
    %15 = arith.mulf %12, %14 : vector<4x256xf32>
    %c0_10 = arith.constant 0 : index
    %c0_11 = arith.constant 0 : index
    %c0_12 = arith.constant 0 : index
    %16 = vector.load %arg5[%c0_10, %c0_11, %c0_12] : memref<1x4x256xf32, #tpu.memory_space<vmem>>, vector<1x4x256xf32>
    %17 = vector.shape_cast %16 : vector<1x4x256xf32> to vector<4x256xf32>
    %18 = vector.shape_cast %15 : vector<4x256xf32> to vector<1x4x256xf32>
    tpu.vector_store %arg5[%c0_10, %c0_11, %c0_12], %18 {strides = array<i32>} : memref<1x4x256xf32, #tpu.memory_space<vmem>>, vector<1x4x256xf32>,
    %c0_13 = arith.constant 0 : index
    %c0_14 = arith.constant 0 : index
    %19 = vector.load %arg8[%c0_13, %c0_14] : memref<4x1xf32, #tpu.memory_space<vmem>>, vector<4x1xf32>
    %cst = arith.constant dense<0.000000e+00> : vector<4xf32>
    %20 = vector.multi_reduction <add>, %12, %cst [1] : vector<4x256xf32> to vector<4xf32>
    %21 = vector.shape_cast %20 : vector<4xf32> to vector<4x1xf32>
    %22 = arith.addf %19, %21 : vector<4x1xf32>
    %c0_15 = arith.constant 0 : index
    %c0_16 = arith.constant 0 : index
    %23 = vector.load %arg8[%c0_15, %c0_16] : memref<4x1xf32, #tpu.memory_space<vmem>>, vector<4x1xf32>
    tpu.vector_store %arg8[%c0_15, %c0_16], %22 {strides = array<i32>} : memref<4x1xf32, #tpu.memory_space<vmem>>, vector<4x1xf32>,
    %c0_17 = arith.constant 0 : index
    %c0_18 = arith.constant 0 : index
    %24 = vector.load %arg9[%c0_17, %c0_18] : memref<4x1xf32, #tpu.memory_space<vmem>>, vector<4x1xf32>
    %25 = arith.mulf %12, %12 : vector<4x256xf32>
    %cst_19 = arith.constant dense<0.000000e+00> : vector<4xf32>
    %26 = vector.multi_reduction <add>, %25, %cst_19 [1] : vector<4x256xf32> to vector<4xf32>
    %27 = vector.shape_cast %26 : vector<4xf32> to vector<4x1xf32>
    %28 = arith.addf %24, %27 : vector<4x1xf32>
    %c0_20 = arith.constant 0 : index
    %c0_21 = arith.constant 0 : index
    %29 = vector.load %arg9[%c0_20, %c0_21] : memref<4x1xf32, #tpu.memory_space<vmem>>, vector<4x1xf32>
    tpu.vector_store %arg9[%c0_20, %c0_21], %28 {strides = array<i32>} : memref<4x1xf32, #tpu.memory_space<vmem>>, vector<4x1xf32>,
    %c0_i32_22 = arith.constant 0 : i32
    %30 = arith.cmpi eq, %arg1, %c0_i32_22 : i32
    %31 = arith.extui %30 : i1 to i32
    %c0_i32_23 = arith.constant 0 : i32
    %32 = arith.cmpi ne, %31, %c0_i32_23 : i32
    scf.if %32 {
      %c0_24 = arith.constant 0 : index
      %c0_25 = arith.constant 0 : index
      %33 = vector.load %arg12[%c0_24, %c0_25] : memref<4x1xf32, #tpu.memory_space<vmem>>, vector<4x1xf32>
      %c0_26 = arith.constant 0 : index
      %c0_27 = arith.constant 0 : index
      %34 = vector.load %arg8[%c0_26, %c0_27] : memref<4x1xf32, #tpu.memory_space<vmem>>, vector<4x1xf32>
      %c0_28 = arith.constant 0 : index
      %c0_29 = arith.constant 0 : index
      %35 = vector.load %arg9[%c0_28, %c0_29] : memref<4x1xf32, #tpu.memory_space<vmem>>, vector<4x1xf32>
      %cst_30 = arith.constant 3.906250e-03 : f32
      %36 = vector.broadcast %cst_30 : f32 to vector<4x1xf32>
      %37 = arith.mulf %34, %36 : vector<4x1xf32>
      %cst_31 = arith.constant 3.906250e-03 : f32
      %38 = vector.broadcast %cst_31 : f32 to vector<4x1xf32>
      %39 = arith.mulf %35, %38 : vector<4x1xf32>
      %40 = arith.mulf %37, %37 : vector<4x1xf32>
      %41 = arith.subf %39, %40 : vector<4x1xf32>
      %42 = arith.addf %33, %37 : vector<4x1xf32>
      %cst_32 = arith.constant 9.990000e-01 : f32
      %43 = vector.broadcast %cst_32 : f32 to vector<4x1xf32>
      %44 = arith.mulf %43, %37 : vector<4x1xf32>
      %45 = arith.mulf %44, %37 : vector<4x1xf32>
      %46 = arith.addf %41, %45 : vector<4x1xf32>
      %47 = vector.shape_cast %42 : vector<4x1xf32> to vector<4x1xf32>
      %48 = vector.broadcast %47 : vector<4x1xf32> to vector<4x128xf32>
      %c0_33 = arith.constant 0 : index
      %c0_34 = arith.constant 0 : index
      %c0_35 = arith.constant 0 : index
      %49 = vector.load %arg6[%c0_33, %c0_34, %c0_35] : memref<1x4x128xf32, #tpu.memory_space<vmem>>, vector<1x4x128xf32>
      %50 = vector.shape_cast %49 : vector<1x4x128xf32> to vector<4x128xf32>
      %51 = vector.shape_cast %48 : vector<4x128xf32> to vector<1x4x128xf32>
      tpu.vector_store %arg6[%c0_33, %c0_34, %c0_35], %51 {strides = array<i32>} : memref<1x4x128xf32, #tpu.memory_space<vmem>>, vector<1x4x128xf32>,
      %52 = vector.shape_cast %46 : vector<4x1xf32> to vector<4x1xf32>
      %53 = vector.broadcast %52 : vector<4x1xf32> to vector<4x128xf32>
      %c0_36 = arith.constant 0 : index
      %c0_37 = arith.constant 0 : index
      %c0_38 = arith.constant 0 : index
      %54 = vector.load %arg7[%c0_36, %c0_37, %c0_38] : memref<1x4x128xf32, #tpu.memory_space<vmem>>, vector<1x4x128xf32>
      %55 = vector.shape_cast %54 : vector<1x4x128xf32> to vector<4x128xf32>
      %56 = vector.shape_cast %53 : vector<4x128xf32> to vector<1x4x128xf32>
      tpu.vector_store %arg7[%c0_36, %c0_37, %c0_38], %56 {strides = array<i32>} : memref<1x4x128xf32, #tpu.memory_space<vmem>>, vector<1x4x128xf32>,
      %c0_39 = arith.constant 0 : index
      %c0_40 = arith.constant 0 : index
      %57 = vector.load %arg10[%c0_39, %c0_40] : memref<4x1xf32, #tpu.memory_space<vmem>>, vector<4x1xf32>
      %cst_41 = arith.constant 9.990000e-01 : f32
      %58 = vector.broadcast %cst_41 : f32 to vector<4x1xf32>
      %59 = arith.mulf %58, %57 : vector<4x1xf32>
      %cst_42 = arith.constant 1.000000e-03 : f32
      %60 = vector.broadcast %cst_42 : f32 to vector<4x1xf32>
      %61 = arith.mulf %60, %42 : vector<4x1xf32>
      %62 = arith.addf %59, %61 : vector<4x1xf32>
      %c0_43 = arith.constant 0 : index
      %c0_44 = arith.constant 0 : index
      %63 = vector.load %arg10[%c0_43, %c0_44] : memref<4x1xf32, #tpu.memory_space<vmem>>, vector<4x1xf32>
      tpu.vector_store %arg10[%c0_43, %c0_44], %62 {strides = array<i32>} : memref<4x1xf32, #tpu.memory_space<vmem>>, vector<4x1xf32>,
      %c0_45 = arith.constant 0 : index
      %c0_46 = arith.constant 0 : index
      %64 = vector.load %arg11[%c0_45, %c0_46] : memref<4x1xf32, #tpu.memory_space<vmem>>, vector<4x1xf32>
      %cst_47 = arith.constant 9.990000e-01 : f32
      %65 = vector.broadcast %cst_47 : f32 to vector<4x1xf32>
      %66 = arith.mulf %65, %64 : vector<4x1xf32>
      %cst_48 = arith.constant 1.000000e-03 : f32
      %67 = vector.broadcast %cst_48 : f32 to vector<4x1xf32>
      %68 = arith.mulf %67, %46 : vector<4x1xf32>
      %69 = arith.addf %66, %68 : vector<4x1xf32>
      %c0_49 = arith.constant 0 : index
      %c0_50 = arith.constant 0 : index
      %70 = vector.load %arg11[%c0_49, %c0_50] : memref<4x1xf32, #tpu.memory_space<vmem>>, vector<4x1xf32>
      tpu.vector_store %arg11[%c0_49, %c0_50], %69 {strides = array<i32>} : memref<4x1xf32, #tpu.memory_space<vmem>>, vector<4x1xf32>,
    } else {
    }
    return
  }
  func.func @transform_0(%arg0: i32, %arg1: i32) -> (i32, i32, i32) {
    %c0_i32 = arith.constant 0 : i32
    %c0_i32_0 = arith.constant 0 : i32
    %c0_i32_1 = arith.constant 0 : i32
    return %arg0, %c0_i32, %c0_i32_0 : i32, i32, i32
  }
  func.func @transform_1(%arg0: i32, %arg1: i32) -> (i32, i32, i32) {
    %c0_i32 = arith.constant 0 : i32
    %c0_i32_0 = arith.constant 0 : i32
    %c0_i32_1 = arith.constant 0 : i32
    return %arg0, %c0_i32, %c0_i32_0 : i32, i32, i32
  }
  func.func @transform_2(%arg0: i32, %arg1: i32) -> (i32, i32, i32) {
    %c0_i32 = arith.constant 0 : i32
    %c0_i32_0 = arith.constant 0 : i32
    return %arg0, %c0_i32, %arg1 : i32, i32, i32
  }
  func.func @transform_3(%arg0: i32, %arg1: i32) -> (i32, i32, i32) {
    %c0_i32 = arith.constant 0 : i32
    %c0_i32_0 = arith.constant 0 : i32
    return %arg0, %c0_i32, %arg1 : i32, i32, i32
  }
  func.func @transform_4(%arg0: i32, %arg1: i32) -> (i32, i32, i32) {
    %c0_i32 = arith.constant 0 : i32
    %c0_i32_0 = arith.constant 0 : i32
    %c0_i32_1 = arith.constant 0 : i32
    return %arg0, %c0_i32, %c0_i32_0 : i32, i32, i32
  }
  func.func @transform_5(%arg0: i32, %arg1: i32) -> (i32, i32, i32) {
    %c0_i32 = arith.constant 0 : i32
    %c0_i32_0 = arith.constant 0 : i32
    %c0_i32_1 = arith.constant 0 : i32
    return %arg0, %c0_i32, %c0_i32_0 : i32, i32, i32
  }
}

</mosaic_0001>

<llo_original>
// kernel: tpu_custom_call.1
$region0: #{tpu_custom_call.1}
  #allocation0 [shape = 'u32[]', space=smem, size = 0x4, offset = 0x4, fixed_abs, tag = 'smem constant byte address 0x4 - core index']
  #allocation1 [shape = 'u32[144,128]{1,0:T(1,128)}', space=vmem, size = 0x12000, scoped, tag = 'internal scratch']
  #allocation2 [shape = 'f32[4,1]{1,0:T(4,128)}', space=vmem, size = 0x800, scoped, tag = 'scratch operand']
  #allocation3 [shape = 'f32[4,1]{1,0:T(4,128)}', space=vmem, size = 0x800, scoped, tag = 'scratch operand']
  #allocation4 [shape = 'f32[4,1]{1,0:T(4,128)}', space=vmem, size = 0x800, scoped, tag = 'scratch operand']
  #allocation5 [shape = 'f32[4,1]{1,0:T(4,128)}', space=vmem, size = 0x800, scoped, tag = 'scratch operand']
  #allocation6 [shape = 'f32[4,1]{1,0:T(4,128)}', space=vmem, size = 0x800, scoped, tag = 'scratch operand']
  #allocation7 [shape = 'f32[4,1]{1,0:T(4,128)}', space=vmem, size = 0x800, scoped, tag = 'scratch operand']
  %s0 = inlined_call_operand.vmem [shape: f32[2,4,1], index: 0, kind: input, shape index: {}]
  %s1 = inlined_call_operand.vmem [shape: f32[2,4,1], index: 1, kind: input, shape index: {}]
  %s2 = inlined_call_operand.vmem [shape: f32[2,4,256], index: 2, kind: input, shape index: {}]
  %s3 = inlined_call_operand.hbm [shape: f32[2,4,256], index: 3, kind: output, shape index: {0}]
  %s4 = inlined_call_operand.hbm [shape: f32[2,4,128], index: 4, kind: output, shape index: {1}]
  %s5 = inlined_call_operand.hbm [shape: f32[2,4,128], index: 5, kind: output, shape index: {2}]
  %6 = xla_tuple %s3, %s4, %s5
  %s7 = sld [smem:[#allocation0]]
  $region73: #{tpu_custom_call.1} parent=0
    _
  %s9 = ssub.s32 1, %s7
  %s10 = scalar_select 0, %s9, %s7
  $region1: #{tpu_custom_call.1} parent=0
    #allocation8 [shape = 'u8[8192]{0}', space=vmem, size = 0x2000, scoped, tag = 'output window, operand 0']
    #allocation9 [shape = 's32[2]{0}', space=sflag, size = 0x8, scoped, tag = 'scoped memory for tpu_custom_call.1']
    #allocation10 [shape = 'u8[4096]{0}', space=vmem, size = 0x1000, scoped, tag = 'output window, operand 1']
    #allocation11 [shape = 's32[2]{0}', space=sflag, size = 0x8, scoped, tag = 'scoped memory for tpu_custom_call.1']
    #allocation12 [shape = 'u8[4096]{0}', space=vmem, size = 0x1000, scoped, tag = 'output window, operand 2']
    %11 = vsyncpa [#allocation9], 0
    %s12 = scalar_lea.sflag [#allocation9], 1
    %13 = vsyncpa %s12, 0
    %14 = vsyncpa [#allocation11], 0
    %s15 = scalar_lea.sflag [#allocation11], 1
    %16 = vsyncpa %s15, 0
    loop: start=0, step=1, limit=4
    $region2: #{tpu_custom_call.1} parent=1 // loop_pre_header
      _
    $region3: #{tpu_custom_call.1} parent=1 // loop_header
      %s18 = sphi 0, %s22
      %p19 = scmp.ge.s32.totalorder %s18, 4
      %s25 = sphi 0, %s37
      %s26 = sphi 0, %s33
      %s27 = sphi 0, %s25
      %s28 = sphi 0, %s26
      %s29 = sphi 0, %s27
      %s30 = sphi 0, %s28
      %s40 = sphi 0, %s42
      %s43 = sphi 0, %s40
      %s44 = sphi 0, %s43
      %s60 = sphi 0, %s44
      %s66 = sphi 0, %s68
      %s69 = sphi 0, %s66
      %s70 = sphi 0, %s69
      %s86 = sphi 0, %s70
      %s94 = sphi 0, %s96
      %s97 = sphi 0, %s94
      %s98 = sphi 0, %s97
      %s114 = sphi 0, %s98
      %s122 = sphi 0, %s124
      %s125 = sphi 0, %s122
      %s126 = sphi 0, %s125
      %s142 = sphi 0, %s126
      %s148 = sphi 0, %s150
      %s151 = sphi 0, %s148
      %s152 = sphi 0, %s151
      %s168 = sphi 0, %s152
      %s174 = sphi 0, %s176
      %s177 = sphi 0, %s174
      %s178 = sphi 0, %s177
      %s194 = sphi 0, %s178
    $region4: #{tpu_custom_call.1} parent=1 // loop_header_branch
      %21 = sbr.rel (%p19) target = $region8
    $region5: #{tpu_custom_call.1} parent=1 // loop_body
      %s23 = ssub.s32 %s18, 1
      %s24 = ssub.s32 %s18, 2
      %s31 = sadd.s32 1, %s26
      %p32 = scmp.ge.s32.totalorder %s31, 1
      %s33 = scalar_select %p32, 0, %s31
      %s34 = sadd.s32 1, %s25
      %s35 = scalar_select %p32, %s34, %s25
      %p36 = scmp.ge.s32.totalorder %s35, 2
      %s37 = scalar_select %p36, 0, %s35
      %s38 = ssub.s32 %s25, %s37
      %p39 = scmp.eq.s32.totalorder %s38, 0
      %s41 = sadd.s32 %s40, 1
      %s42 = scalar_select %p39, %s40, %s41
      %p45 = pneg %p39
      %p46 = scmp.eq.s32.totalorder %s18, 1
      %p47 = por %p45, %p46
      %p48 = scmp.ne.s32.totalorder %s40, %s43
      %p49 = scmp.eq.s32.totalorder %s18, 0
      %p50 = por %p48, %p49
      %p51 = scmp.ne.s32.totalorder %s40, %s43
      %p52 = scmp.eq.s32.totalorder %s23, 1
      %p53 = por %p51, %p52
      %p54 = scmp.ne.s32.totalorder %s43, %s44
      %p55 = scmp.eq.s32.totalorder %s23, 0
      %p56 = por %p54, %p55
      %p57 = scmp.ne.s32.totalorder %s43, %s44
      %p58 = scmp.eq.s32.totalorder %s24, 1
      %p59 = por %p57, %p58
      %p61 = scmp.ne.s32.totalorder %s44, %s60
      %p62 = scmp.eq.s32.totalorder %s24, 0
      %p63 = por %p61, %p62
      %s64 = ssub.s32 %s25, %s37
      %p65 = scmp.eq.s32.totalorder %s64, 0
      %s67 = sadd.s32 %s66, 1
      %s68 = scalar_select %p65, %s66, %s67
      %p71 = pneg %p65
      %p72 = scmp.eq.s32.totalorder %s18, 1
      %p73 = por %p71, %p72
      %p74 = scmp.ne.s32.totalorder %s66, %s69
      %p75 = scmp.eq.s32.totalorder %s18, 0
      %p76 = por %p74, %p75
      %p77 = scmp.ne.s32.totalorder %s66, %s69
      %p78 = scmp.eq.s32.totalorder %s23, 1
      %p79 = por %p77, %p78
      %p80 = scmp.ne.s32.totalorder %s69, %s70
      %p81 = scmp.eq.s32.totalorder %s23, 0
      %p82 = por %p80, %p81
      %p83 = scmp.ne.s32.totalorder %s69, %s70
      %p84 = scmp.eq.s32.totalorder %s24, 1
      %p85 = por %p83, %p84
      %p87 = scmp.ne.s32.totalorder %s70, %s86
      %p88 = scmp.eq.s32.totalorder %s24, 0
      %p89 = por %p87, %p88
      %s90 = ssub.s32 %s25, %s37
      %s91 = ssub.s32 %s26, %s33
      %s92 = sor.u32 %s90, %s91
      %p93 = scmp.eq.s32.totalorder %s92, 0
      %s95 = sadd.s32 %s94, 1
      %s96 = scalar_select %p93, %s94, %s95
      %p99 = pneg %p93
      %p100 = scmp.eq.s32.totalorder %s18, 1
      %p101 = por %p99, %p100
      %p102 = scmp.ne.s32.totalorder %s94, %s97
      %p103 = scmp.eq.s32.totalorder %s18, 0
      %p104 = por %p102, %p103
      %p105 = scmp.ne.s32.totalorder %s94, %s97
      %p106 = scmp.eq.s32.totalorder %s23, 1
      %p107 = por %p105, %p106
      %p108 = scmp.ne.s32.totalorder %s97, %s98
      %p109 = scmp.eq.s32.totalorder %s23, 0
      %p110 = por %p108, %p109
      %p111 = scmp.ne.s32.totalorder %s97, %s98
      %p112 = scmp.eq.s32.totalorder %s24, 1
      %p113 = por %p111, %p112
      %p115 = scmp.ne.s32.totalorder %s98, %s114
      %p116 = scmp.eq.s32.totalorder %s24, 0
      %p117 = por %p115, %p116
      %s118 = ssub.s32 %s25, %s37
      %s119 = ssub.s32 %s26, %s33
      %s120 = sor.u32 %s118, %s119
      %p121 = scmp.eq.s32.totalorder %s120, 0
      %s123 = sadd.s32 %s122, 1
      %s124 = scalar_select %p121, %s122, %s123
      %p127 = pneg %p121
      %p128 = scmp.eq.s32.totalorder %s18, 1
      %p129 = por %p127, %p128
      %p130 = scmp.ne.s32.totalorder %s122, %s125
      %p131 = scmp.eq.s32.totalorder %s18, 0
      %p132 = por %p130, %p131
      %p133 = scmp.ne.s32.totalorder %s122, %s125
      %p134 = scmp.eq.s32.totalorder %s23, 1
      %p135 = por %p133, %p134
      %p136 = scmp.ne.s32.totalorder %s125, %s126
      %p137 = scmp.eq.s32.totalorder %s23, 0
      %p138 = por %p136, %p137
      %p139 = scmp.ne.s32.totalorder %s125, %s126
      %p140 = scmp.eq.s32.totalorder %s24, 1
      %p141 = por %p139, %p140
      %p143 = scmp.ne.s32.totalorder %s126, %s142
      %p144 = scmp.eq.s32.totalorder %s24, 0
      %p145 = por %p143, %p144
      %s146 = ssub.s32 %s25, %s37
      %p147 = scmp.eq.s32.totalorder %s146, 0
      %s149 = sadd.s32 %s148, 1
      %s150 = scalar_select %p147, %s148, %s149
      %p153 = pneg %p147
      %p154 = scmp.eq.s32.totalorder %s18, 1
      %p155 = por %p153, %p154
      %p156 = scmp.ne.s32.totalorder %s148, %s151
      %p157 = scmp.eq.s32.totalorder %s18, 0
      %p158 = por %p156, %p157
      %p159 = scmp.ne.s32.totalorder %s148, %s151
      %p160 = scmp.eq.s32.totalorder %s23, 1
      %p161 = por %p159, %p160
      %p162 = scmp.ne.s32.totalorder %s151, %s152
      %p163 = scmp.eq.s32.totalorder %s23, 0
      %p164 = por %p162, %p163
      %p165 = scmp.ne.s32.totalorder %s151, %s152
      %p166 = scmp.eq.s32.totalorder %s24, 1
      %p167 = por %p165, %p166
      %p169 = scmp.ne.s32.totalorder %s152, %s168
      %p170 = scmp.eq.s32.totalorder %s24, 0
      %p171 = por %p169, %p170
      %s172 = ssub.s32 %s25, %s37
      %p173 = scmp.eq.s32.totalorder %s172, 0
      %s175 = sadd.s32 %s174, 1
      %s176 = scalar_select %p173, %s174, %s175
      %p179 = pneg %p173
      %p180 = scmp.eq.s32.totalorder %s18, 1
      %p181 = por %p179, %p180
      %p182 = scmp.ne.s32.totalorder %s174, %s177
      %p183 = scmp.eq.s32.totalorder %s18, 0
      %p184 = por %p182, %p183
      %p185 = scmp.ne.s32.totalorder %s174, %s177
      %p186 = scmp.eq.s32.totalorder %s23, 1
      %p187 = por %p185, %p186
      %p188 = scmp.ne.s32.totalorder %s177, %s178
      %p189 = scmp.eq.s32.totalorder %s23, 0
      %p190 = por %p188, %p189
      %p191 = scmp.ne.s32.totalorder %s177, %s178
      %p192 = scmp.eq.s32.totalorder %s24, 1
      %p193 = por %p191, %p192
      %p195 = scmp.ne.s32.totalorder %s178, %s194
      %p196 = scmp.eq.s32.totalorder %s24, 0
      %p197 = por %p195, %p196
      %p198 = scmp.le.s32.totalorder 1, %s18
      %p199 = scmp.lt.s32.totalorder %s18, 3
      %p200 = pnand %p198, %p199
      %p201 = pneg %p200
      // Predicated region
      $region9: #{tpu_custom_call.1} parent=5 // pred_check
        _
      $region10: #{tpu_custom_call.1} parent=5 // pred_check_branch
        %203 = sbr.rel (%p200) target = $region12
      $region11: #{tpu_custom_call.1} parent=5 // pred_region
        %s204 = ssub.s32 %s18, 1
      $region12: #{tpu_custom_call.1} parent=5 // pred_fallthru
        _
      %p205 = scmp.lt.s32.totalorder %s18, 2
      // Predicated region
      $region13: #{tpu_custom_call.1} parent=5 // pred_check
        %p206 = pneg %p205
      $region14: #{tpu_custom_call.1} parent=5 // pred_check_branch
        %208 = sbr.rel (%p206) target = $region16
      $region15: #{tpu_custom_call.1} parent=5 // pred_region
        // Predicated region
        $region17: #{tpu_custom_call.1} parent=15 // pred_check
          %p209 = pneg %p50
        $region18: #{tpu_custom_call.1} parent=15 // pred_check_branch
          %211 = sbr.rel (%p209) target = $region20
        $region19: #{tpu_custom_call.1} parent=15 // pred_region
          %p212 = scmp.lt.s32.totalorder %s25, 1
          %s213 = scalar_select %p212, %s25, 1
          %s214 = smul.addr %s213, 4
          %s215 = scalar_lea.vmem %s0, %s214
        $region20: #{tpu_custom_call.1} parent=15 // pred_fallthru
          _
        // Predicated region
        $region21: #{tpu_custom_call.1} parent=15 // pred_check
          %p216 = pneg %p76
        $region22: #{tpu_custom_call.1} parent=15 // pred_check_branch
          %218 = sbr.rel (%p216) target = $region24
        $region23: #{tpu_custom_call.1} parent=15 // pred_region
          %p219 = scmp.lt.s32.totalorder %s25, 1
          %s220 = scalar_select %p219, %s25, 1
          %s221 = smul.addr %s220, 4
          %s222 = scalar_lea.vmem %s1, %s221
        $region24: #{tpu_custom_call.1} parent=15 // pred_fallthru
          _
        // Predicated region
        $region25: #{tpu_custom_call.1} parent=15 // pred_check
          %p223 = pneg %p104
        $region26: #{tpu_custom_call.1} parent=15 // pred_check_branch
          %225 = sbr.rel (%p223) target = $region28
        $region27: #{tpu_custom_call.1} parent=15 // pred_region
          %s226 = smul.u32 2, %s26
          %p227 = scmp.lt.s32.totalorder %s25, 1
          %s228 = scalar_select %p227, %s25, 1
          %p229 = scmp.lt.s32.totalorder %s226, 1
          %s230 = scalar_select %p229, %s226, 1
          %s231 = smul.addr %s228, 2
          %s232 = sadd.s32 %s230, %s231
          %s233 = smul.addr %s232, 4
          %s234 = scalar_lea.vmem %s2, %s233
          %s235 = smul.u32 2, %s26
        $region28: #{tpu_custom_call.1} parent=15 // pred_fallthru
          _
      $region16: #{tpu_custom_call.1} parent=5 // pred_fallthru
        _
      %p236 = scmp.le.s32.totalorder 1, %s18
      %p237 = scmp.lt.s32.totalorder %s18, 3
      %p238 = pnand %p236, %p237
      %p239 = pneg %p238
      // Predicated region
      $region29: #{tpu_custom_call.1} parent=5 // pred_check
        _
      $region30: #{tpu_custom_call.1} parent=5 // pred_check_branch
        %241 = sbr.rel (%p238) target = $region32
      $region31: #{tpu_custom_call.1} parent=5 // pred_region
        %s242 = ssub.s32 %s18, 1
        %p243 = scmp.lt.s32.totalorder %s27, 1
        %s244 = scalar_select %p243, %s27, 1
        %s245 = smul.addr %s244, 4
        %s246 = scalar_lea.vmem %s0, %s245
        %p247 = pneg %p56
        %p248 = pneg %p53
        %p249 = scmp.lt.s32.totalorder %s27, 1
        %s250 = scalar_select %p249, %s27, 1
        %s251 = smul.addr %s250, 4
        %s252 = scalar_lea.vmem %s1, %s251
        %p253 = pneg %p82
        %p254 = pneg %p79
        %s255 = smul.u32 2, %s28
        %p256 = scmp.lt.s32.totalorder %s27, 1
        %s257 = scalar_select %p256, %s27, 1
        %p258 = scmp.lt.s32.totalorder %s255, 1
        %s259 = scalar_select %p258, %s255, 1
        %s260 = smul.addr %s257, 2
        %s261 = sadd.s32 %s259, %s260
        %s262 = smul.addr %s261, 4
        %s263 = scalar_lea.vmem %s2, %s262
        %p264 = pneg %p110
        %p265 = pneg %p107
        %p266 = pneg %p138
        %p267 = pneg %p135
        %s268 = sand.u32 %s125, 1
        %s269 = scalar_lea.sflag [#allocation9], %s268
        %s270 = sand.u32 %s125, 1
        %s271 = smul.addr %s270, 8
        %s272 = scalar_lea.vmem [#allocation8], %s271
        %p273 = pneg %p164
        %p274 = pneg %p161
        %s275 = sand.u32 %s23, 1
        %s276 = scalar_lea.sflag [#allocation11], %s275
        %s277 = sand.u32 %s151, 1
        %s278 = smul.addr %s277, 4
        %s279 = scalar_lea.vmem [#allocation10], %s278
        %p280 = pneg %p190
        %p281 = pneg %p187
        %s282 = sand.u32 %s23, 1
        %s283 = scalar_lea.sflag [#allocation11], %s282
        %s284 = sand.u32 %s177, 1
        %s285 = smul.addr %s284, 4
        %s286 = scalar_lea.vmem [#allocation12], %s285
        %p287 = scmp.lt.s32.totalorder %s27, 1
        %s288 = scalar_select %p287, %s27, 1
        %s289 = smul.addr %s288, 4
        %s290 = scalar_lea.vmem %s0, %s289
        %p291 = scmp.lt.s32.totalorder %s27, 1
        %s292 = scalar_select %p291, %s27, 1
        %s293 = smul.addr %s292, 4
        %s294 = scalar_lea.vmem %s1, %s293
        %s295 = smul.u32 2, %s28
        %p296 = scmp.lt.s32.totalorder %s27, 1
        %s297 = scalar_select %p296, %s27, 1
        %p298 = scmp.lt.s32.totalorder %s295, 1
        %s299 = scalar_select %p298, %s295, 1
        %s300 = smul.addr %s297, 2
        %s301 = sadd.s32 %s299, %s300
        %s302 = smul.addr %s301, 4
        %s303 = scalar_lea.vmem %s2, %s302
        %s304 = smul.u32 2, %s28
        %s305 = smul.u32 2, %s28
        %p306 = scmp.eq.s32.totalorder %s27, 0
        %p307 = scmp.eq.s32.totalorder %s28, 0
        %p308 = pnand %p306, %p307
        %p309 = pneg %p308
        // Predicated region
        $region33: #{tpu_custom_call.1} parent=31 // pred_check
          _
        $region34: #{tpu_custom_call.1} parent=31 // pred_check_branch
          %311 = sbr.rel (%p308) target = $region36
        $region35: #{tpu_custom_call.1} parent=31 // pred_region
          %vm312 = vcmask 3072
          %313 = vst.msk [vmem:[#allocation4] sm:$0xf] %vm312, 0.0
          %314 = vst.msk [vmem:[#allocation5] sm:$0xf] %vm312, 0.0
        $region36: #{tpu_custom_call.1} parent=31 // pred_fallthru
          _
        // Predicated region
        $region37: #{tpu_custom_call.1} parent=31 // pred_check
          %p315 = pneg %p307
        $region38: #{tpu_custom_call.1} parent=31 // pred_check_branch
          %317 = sbr.rel (%p315) target = $region40
        $region39: #{tpu_custom_call.1} parent=31 // pred_region
          %v318 = vld [vmem:[%s290] sm:$0xf]
          %v319 = vld [vmem:[#allocation4] sm:$0xf]
          %v320 = vadd.f32 %v318, %v319
          %vm321 = vcmask 3072
          %322 = vst.msk [vmem:[#allocation6] sm:$0xf] %vm321, %v320
          %v323 = vld [vmem:[%s294] sm:$0xf]
          %v324 = vld [vmem:[#allocation5] sm:$0xf]
          %v325 = vadd.f32 %v323, %v324
          %v326 = vadd.f32 %v325, 1e-05
          %v327 = vrsqrt.pop %v326
          %328 = vst.msk [vmem:[#allocation7] sm:$0xf] %vm321, %v327
          %329 = vst.msk [vmem:[#allocation2] sm:$0xf] %vm321, 0.0
          %330 = vst.msk [vmem:[#allocation3] sm:$0xf] %vm321, 0.0
        $region40: #{tpu_custom_call.1} parent=31 // pred_fallthru
          _
        %v331 = vld [vmem:[%s303] sm:$0xff]
        %v332 = vld [vmem:[#allocation6] sm:$0xf]
        %334 = vset.pattern.permute.xlu0 0
        %335 = vperm.xlu0 %334, %v332
        %v336 = vpop.permute.xlu0 %335
        %v338 = vunpack.c.l.s4 839922192
        %v339 = vunpack.c.0.s8 %v338
        %v340 = vlaneseq
        %v341 = vshrl.u32 %v340, 7
        %v342 = vsub.s32 %v339, %v341
        %v343 = vrot.slane %v336, %v342
        %v345 = vsub.f32 %v331, %v343
        %v346 = vld [vmem:[#allocation7] sm:$0xf]
        %348 = vset.pattern.permute.xlu0 0
        %349 = vperm.xlu0 %348, %v346
        %v350 = vpop.permute.xlu0 %349
        %v352 = vunpack.c.l.s4 839922192
        %v353 = vunpack.c.0.s8 %v352
        %v354 = vlaneseq
        %v355 = vshrl.u32 %v354, 7
        %v356 = vsub.s32 %v353, %v355
        %v357 = vrot.slane %v350, %v356
        %v359 = vmul.f32 %v345, %v357
        %360 = vst [vmem:[%s272] sm:$0xff] %v359
        %v361 = vld [vmem:[#allocation2] sm:$0xf]
        %v363 = vcombine.high %v345, %v345
        %vm365 = vcmask 1043456
        %v366 = vsel %vm365, %v345, 0.0
        %v367 = vsel %vm365, %v363, 0.0
        %v368 = vadd.f32 %v366, %v367
        %369 = vadd.xlane.f32.xlu0 %v368
        %v370 = vpop.xlane.xlu0 %369
        %v371 = vadd.f32 %v361, %v370
        %vm372 = vcmask 3072
        %373 = vst.msk [vmem:[#allocation2] sm:$0xf] %vm372, %v371
        %v374 = vld [vmem:[#allocation3] sm:$0xf]
        %v375 = vmul.f32 %v345, %v345
        %v377 = vcombine.high %v375, %v375
        %v379 = vsel %vm365, %v375, 0.0
        %v380 = vsel %vm365, %v377, 0.0
        %v381 = vadd.f32 %v379, %v380
        %382 = vadd.xlane.f32.xlu0 %v381
        %v383 = vpop.xlane.xlu0 %382
        %v384 = vadd.f32 %v374, %v383
        %385 = vst.msk [vmem:[#allocation3] sm:$0xf] %vm372, %v384
        // Predicated region
        $region41: #{tpu_custom_call.1} parent=31 // pred_check
          %p386 = pneg %p307
        $region42: #{tpu_custom_call.1} parent=31 // pred_check_branch
          %388 = sbr.rel (%p386) target = $region44
        $region43: #{tpu_custom_call.1} parent=31 // pred_region
          %v389 = vld [vmem:[#allocation6] sm:$0xf]
          %v390 = vld [vmem:[#allocation2] sm:$0xf]
          %v391 = vld [vmem:[#allocation3] sm:$0xf]
          %v392 = vmul.f32 %v390, 0.00390625
          %v393 = vmul.f32 %v391, 0.00390625
          %v394 = vmul.f32 %v392, %v392
          %v395 = vsub.f32 %v393, %v394
          %v396 = vadd.f32 %v389, %v392
          %v397 = vmul.f32 %v392, 0.999
          %v398 = vmul.f32 %v397, %v392
          %v399 = vadd.f32 %v395, %v398
          %401 = vset.pattern.permute.xlu0 0
          %402 = vperm.xlu0 %401, %v396
          %v403 = vpop.permute.xlu0 %402
          %405 = vst [vmem:[%s279] sm:$0xf] %v403
          %407 = vset.pattern.permute.xlu0 0
          %408 = vperm.xlu0 %407, %v399
          %v409 = vpop.permute.xlu0 %408
          %411 = vst [vmem:[%s286] sm:$0xf] %v409
          %v412 = vld [vmem:[#allocation4] sm:$0xf]
          %v413 = vmul.f32 %v412, 0.999
          %v414 = vmul.f32 %v396, 0.001
          %v415 = vadd.f32 %v413, %v414
          %416 = vst.msk [vmem:[#allocation4] sm:$0xf] %vm372, %v415
          %v417 = vld [vmem:[#allocation5] sm:$0xf]
          %v418 = vmul.f32 %v417, 0.999
          %v419 = vmul.f32 %v399, 0.001
          %v420 = vadd.f32 %v418, %v419
          %421 = vst.msk [vmem:[#allocation5] sm:$0xf] %vm372, %v420
        $region44: #{tpu_custom_call.1} parent=31 // pred_fallthru
          _
        %s422 = sand.u32 %s125, 1
        %s423 = scalar_lea.sflag [#allocation9], %s422
        %s424 = sand.u32 %s125, 1
        %s425 = smul.addr %s424, 8
        %s426 = scalar_lea.vmem [#allocation8], %s425
        %s427 = sand.u32 %s23, 1
        %s428 = scalar_lea.sflag [#allocation11], %s427
        %s429 = sand.u32 %s151, 1
        %s430 = smul.addr %s429, 4
        %s431 = scalar_lea.vmem [#allocation10], %s430
        %s432 = sand.u32 %s23, 1
        %s433 = scalar_lea.sflag [#allocation11], %s432
        %s434 = sand.u32 %s177, 1
        %s435 = smul.addr %s434, 4
        %s436 = scalar_lea.vmem [#allocation12], %s435
        // Predicated region
        $region45: #{tpu_custom_call.1} parent=31 // pred_check
          %p437 = pneg %p135
        $region46: #{tpu_custom_call.1} parent=31 // pred_check_branch
          %439 = sbr.rel (%p437) target = $region48
        $region47: #{tpu_custom_call.1} parent=31 // pred_region
          %s440 = smul.u32 2, %s28
          %s442 = ssub.s32 128, 128
          %443 = vsyncadd %s423, %s442
          %s444 = smul.addr %s27, 2
          %s445 = sadd.s32 %s440, %s444
          %s446 = smul.addr %s445, 64
          %s447 = scalar_lea.hbm %s3, %s446
          %s449 = sshll.u32 %s426, 4
          %s450 = int_to_ptr.vmem [resolvable:$true] %s449
          %452 = dma.vmem_to_hbm [thread:$0]  %s450, 128, %s447, %s423
        $region48: #{tpu_custom_call.1} parent=31 // pred_fallthru
          _
        // Predicated region
        $region49: #{tpu_custom_call.1} parent=31 // pred_check
          %p453 = pneg %p161
        $region50: #{tpu_custom_call.1} parent=31 // pred_check_branch
          %455 = sbr.rel (%p453) target = $region52
        $region51: #{tpu_custom_call.1} parent=31 // pred_region
          %s457 = ssub.s32 64, 64
          %458 = vsyncadd %s428, %s457
          %s459 = smul.addr %s27, 64
          %s460 = scalar_lea.hbm %s4, %s459
          %s462 = sshll.u32 %s431, 4
          %s463 = int_to_ptr.vmem [resolvable:$true] %s462
          %465 = dma.vmem_to_hbm [thread:$0]  %s463, 64, %s460, %s428
        $region52: #{tpu_custom_call.1} parent=31 // pred_fallthru
          _
        // Predicated region
        $region53: #{tpu_custom_call.1} parent=31 // pred_check
          %p466 = pneg %p187
        $region54: #{tpu_custom_call.1} parent=31 // pred_check_branch
          %468 = sbr.rel (%p466) target = $region56
        $region55: #{tpu_custom_call.1} parent=31 // pred_region
          %s470 = ssub.s32 64, 64
          %471 = vsyncadd %s433, %s470
          %s472 = smul.addr %s27, 64
          %s473 = scalar_lea.hbm %s5, %s472
          %s475 = sshll.u32 %s436, 4
          %s476 = int_to_ptr.vmem [resolvable:$true] %s475
          %478 = dma.vmem_to_hbm [thread:$0]  %s476, 64, %s473, %s433
        $region56: #{tpu_custom_call.1} parent=31 // pred_fallthru
          _
      $region32: #{tpu_custom_call.1} parent=5 // pred_fallthru
        _
      %p479 = scmp.le.s32.totalorder 2, %s18
      // Predicated region
      $region57: #{tpu_custom_call.1} parent=5 // pred_check
        %p480 = pneg %p479
      $region58: #{tpu_custom_call.1} parent=5 // pred_check_branch
        %482 = sbr.rel (%p480) target = $region60
      $region59: #{tpu_custom_call.1} parent=5 // pred_region
        %s483 = ssub.s32 %s18, 2
        // Predicated region
        $region61: #{tpu_custom_call.1} parent=59 // pred_check
          %p484 = pneg %p141
        $region62: #{tpu_custom_call.1} parent=59 // pred_check_branch
          %486 = sbr.rel (%p484) target = $region64
        $region63: #{tpu_custom_call.1} parent=59 // pred_region
          %s487 = sand.u32 %s126, 1
          %s488 = scalar_lea.sflag [#allocation9], %s487
          %s489 = sand.u32 %s126, 1
          %s490 = smul.addr %s489, 8
          %s491 = scalar_lea.vmem [#allocation8], %s490
          %492 = dma.done %s488, 128
        $region64: #{tpu_custom_call.1} parent=59 // pred_fallthru
          _
        // Predicated region
        $region65: #{tpu_custom_call.1} parent=59 // pred_check
          %p493 = pneg %p167
        $region66: #{tpu_custom_call.1} parent=59 // pred_check_branch
          %495 = sbr.rel (%p493) target = $region68
        $region67: #{tpu_custom_call.1} parent=59 // pred_region
          %s496 = sand.u32 %s24, 1
          %s497 = scalar_lea.sflag [#allocation11], %s496
          %s498 = sand.u32 %s152, 1
          %s499 = smul.addr %s498, 4
          %s500 = scalar_lea.vmem [#allocation10], %s499
          %501 = dma.done %s497, 64
        $region68: #{tpu_custom_call.1} parent=59 // pred_fallthru
          _
        // Predicated region
        $region69: #{tpu_custom_call.1} parent=59 // pred_check
          %p502 = pneg %p193
        $region70: #{tpu_custom_call.1} parent=59 // pred_check_branch
          %504 = sbr.rel (%p502) target = $region72
        $region71: #{tpu_custom_call.1} parent=59 // pred_region
          %s505 = sand.u32 %s24, 1
          %s506 = scalar_lea.sflag [#allocation11], %s505
          %s507 = sand.u32 %s178, 1
          %s508 = smul.addr %s507, 4
          %s509 = scalar_lea.vmem [#allocation12], %s508
          %510 = dma.done %s506, 64
        $region72: #{tpu_custom_call.1} parent=59 // pred_fallthru
          _
      $region60: #{tpu_custom_call.1} parent=5 // pred_fallthru
        _
    $region6: #{tpu_custom_call.1} parent=1 // loop_footer
      %s22 = sadd.s32 1, %s18
    $region7: #{tpu_custom_call.1} parent=1 // loop_footer_branch
      %17 = sbr.rel target = $region3
    $region8: #{tpu_custom_call.1} parent=1 // loop_exit
      _
    %511 = vsyncpa [#allocation9], 1
    %s512 = scalar_lea.sflag [#allocation9], 1
    %513 = vsyncpa %s512, 1
    %514 = vsyncpa [#allocation11], 1
    %s515 = scalar_lea.sflag [#allocation11], 1
    %516 = vsyncpa %s515, 1

</llo_original>
